<compile_context>
chip_gen: v7x
topology: tpu7x:2x2x1
jax: 0.10.0
libtpu: 0.0.40
codegen_flags: <defaults>
</compile_context>

<pallas_src>
import math

import jax
import jax.numpy as jnp
from jax.experimental import pallas as pl
from jax.experimental.pallas import tpu as pltpu

# ---- config (mirrors the shapes implied by the PyTorch __init__) -----------
ENCODER_LAYERS = 4
DECODER_LAYERS = 4
ALL_LAYERS = ENCODER_LAYERS + DECODER_LAYERS        # L = 8 (sequence length)
D_MODEL = 32                                        # router_input_dim
N_HEAD = 4
HEAD_DIM = D_MODEL // N_HEAD                        # 8
D_FF = 64                                           # dim_feedforward
BLOCK_NUM = 8                                       # router_block_num
LN_EPS = 1e-5
BATCH = 2
BL = BATCH * ALL_LAYERS                             # flattened rows = 16
LANES = 128                                         # lane-dense slab / output width
NEG_INF = -1e30

# MXU operands in bf16 with f32 accumulation (elementwise math stays f32).
MXU_DTYPE = jnp.bfloat16


def _align8(n):
    return ((n + 7) // 8) * 8


# ---- parameter-slab row layout (f32, 128 lanes, zero padded) ----------------
# Every region starts on an 8-row (sublane) boundary -> aligned static slices.
ROW_POS = 0                                # BL rows, cols [0, D)    pos embedding tiled per batch
ROW_MASK = ROW_POS + _align8(BL)           # BL rows, cols [0, BL)   additive batch-block mask
ROW_WIN = ROW_MASK + _align8(BL)           # D rows,  cols [0, 3D)   in_proj_weight.T
ROW_WOUT = ROW_WIN + _align8(D_MODEL)      # D rows,  cols [0, D)    out_proj.weight.T
ROW_W1 = ROW_WOUT + _align8(D_MODEL)       # D rows,  cols [0, F)    linear1.weight.T
ROW_W2 = ROW_W1 + _align8(D_MODEL)         # F rows,  cols [0, D)    linear2.weight.T
ROW_WP = ROW_W2 + _align8(D_FF)            # D rows,  cols [0, 128)  proj.weight.T zero-padded
ROW_BIN = ROW_WP + _align8(D_MODEL)        # 1 row,   cols [0, 3D)
ROW_BOUT = ROW_BIN + 8
ROW_G1 = ROW_BOUT + 8
ROW_BE1 = ROW_G1 + 8
ROW_B1 = ROW_BE1 + 8
ROW_B2 = ROW_B1 + 8
ROW_G2 = ROW_B2 + 8
ROW_BE2 = ROW_G2 + 8
ROW_BP = ROW_BE2 + 8                       # 1 row,   cols [0, 128)  proj.bias zero-padded
SLAB_ROWS = ROW_BP + 8                     # multiple of 8


def pack_params(params, batch=BATCH):
    """Pack every parameter into one (SLAB_ROWS, 128) f32 slab.

    Also stores the batch-tiled positional table and the constant additive
    block-diagonal attention mask (0 within a batch element, -1e30 across).
    Pure layout plumbing -- no model arithmetic happens here.
    """
    def put(slab, row, mat):
        mat = jnp.asarray(mat, jnp.float32)
        if mat.ndim == 1:
            mat = mat[None, :]
        r, c = mat.shape
        return slab.at[row:row + r, 0:c].set(mat)

    slab = jnp.zeros((SLAB_ROWS, LANES), jnp.float32)
    slab = put(slab, ROW_POS, jnp.tile(params['pos'], (batch, 1)))            # (B*L, D)
    rows = jnp.arange(batch * ALL_LAYERS) // ALL_LAYERS
    mask = jnp.where(rows[:, None] == rows[None, :], 0.0, NEG_INF).astype(jnp.float32)
    slab = put(slab, ROW_MASK, mask)                                          # (B*L, B*L)
    slab = put(slab, ROW_WIN, params['w_in'].T)                               # (D, 3D)
    slab = put(slab, ROW_WOUT, params['w_out'].T)                             # (D, D)
    slab = put(slab, ROW_W1, params['w1'].T)                                  # (D, F)
    slab = put(slab, ROW_W2, params['w2'].T)                                  # (F, D)
    slab = put(slab, ROW_WP, params['wp'].T)                                  # (D, P) -> lanes [0, P)
    slab = put(slab, ROW_BIN, params['b_in'])
    slab = put(slab, ROW_BOUT, params['b_out'])
    slab = put(slab, ROW_G1, params['g1'])
    slab = put(slab, ROW_BE1, params['be1'])
    slab = put(slab, ROW_B1, params['b1'])
    slab = put(slab, ROW_B2, params['b2'])
    slab = put(slab, ROW_G2, params['g2'])
    slab = put(slab, ROW_BE2, params['be2'])
    slab = put(slab, ROW_BP, params['bp'])
    return slab


def _layernorm(x, gamma, beta):
    mu = jnp.mean(x, axis=-1, keepdims=True)
    d = x - mu
    var = jnp.mean(d * d, axis=-1, keepdims=True)
    return d * jax.lax.rsqrt(var + LN_EPS) * gamma + beta


def router_kernel(task_ref, slab_ref, out_ref):
    f32 = jnp.float32
    mx = lambda a: a.astype(MXU_DTYPE)

    # ---- carve the parameter slab (static, sublane-aligned slices) ----------
    pos = slab_ref[ROW_POS:ROW_POS + BL, 0:D_MODEL]                  # (BL, D)
    mask = slab_ref[ROW_MASK:ROW_MASK + BL, 0:BL]                    # (BL, BL) additive
    w_inT = slab_ref[ROW_WIN:ROW_WIN + D_MODEL, 0:3 * D_MODEL]       # (D, 3D)
    w_outT = slab_ref[ROW_WOUT:ROW_WOUT + D_MODEL, 0:D_MODEL]        # (D, D)
    w1T = slab_ref[ROW_W1:ROW_W1 + D_MODEL, 0:D_FF]                  # (D, F)
    w2T = slab_ref[ROW_W2:ROW_W2 + D_FF, 0:D_MODEL]                  # (F, D)
    wpT = slab_ref[ROW_WP:ROW_WP + D_MODEL, :]                       # (D, 128) zero-padded
    b_in = slab_ref[ROW_BIN:ROW_BIN + 1, 0:3 * D_MODEL]              # (1, 3D)
    b_out = slab_ref[ROW_BOUT:ROW_BOUT + 1, 0:D_MODEL]
    g1 = slab_ref[ROW_G1:ROW_G1 + 1, 0:D_MODEL]
    be1 = slab_ref[ROW_BE1:ROW_BE1 + 1, 0:D_MODEL]
    b1 = slab_ref[ROW_B1:ROW_B1 + 1, 0:D_FF]
    b2 = slab_ref[ROW_B2:ROW_B2 + 1, 0:D_MODEL]
    g2 = slab_ref[ROW_G2:ROW_G2 + 1, 0:D_MODEL]
    be2 = slab_ref[ROW_BE2:ROW_BE2 + 1, 0:D_MODEL]
    bp = slab_ref[ROW_BP:ROW_BP + 1, :]                              # (1, 128) zero-padded

    # ---- embeddings: task rows (pre-replicated per layer) + positions -------
    x = task_ref[...] + pos                                          # (BL, D) f32

    # ---- multi-head self-attention: one 2-D qkv matmul, batched heads -------
    qkv = jnp.dot(mx(x), mx(w_inT),
                  preferred_element_type=f32) + b_in                 # (BL, 3D) f32
    qkv_b = mx(qkv)                                                  # single bf16 cast
    qh = jnp.stack([qkv_b[:, h * HEAD_DIM:(h + 1) * HEAD_DIM]
                    for h in range(N_HEAD)], axis=0)                 # (H, BL, hd)
    kh = jnp.stack([qkv_b[:, D_MODEL + h * HEAD_DIM:D_MODEL + (h + 1) * HEAD_DIM]
                    for h in range(N_HEAD)], axis=0)
    vh = jnp.stack([qkv_b[:, 2 * D_MODEL + h * HEAD_DIM:2 * D_MODEL + (h + 1) * HEAD_DIM]
                    for h in range(N_HEAD)], axis=0)

    scale = 1.0 / math.sqrt(HEAD_DIM)
    s = jnp.einsum('hqd,hkd->hqk', qh, kh,
                   preferred_element_type=f32) * scale + mask        # (H, BL, BL)
    s = s - jnp.max(s, axis=-1, keepdims=True)
    e = jnp.exp(s)
    p = e * pl.reciprocal(jnp.sum(e, axis=-1, keepdims=True), approx=True)
    oh = jnp.einsum('hqk,hkd->hqd', mx(p), vh,
                    preferred_element_type=f32)                      # (H, BL, hd)
    o = jnp.concatenate([oh[h] for h in range(N_HEAD)], axis=1)      # (BL, D)
    attn = jnp.dot(mx(o), mx(w_outT),
                   preferred_element_type=f32) + b_out               # (BL, D)

    x = _layernorm(x + attn, g1, be1)

    # ---- feed-forward: relu(x W1^T + b1) W2^T + b2 ---------------------------
    h1 = jnp.dot(mx(x), mx(w1T), preferred_element_type=f32) + b1    # (BL, F)
    h1 = jnp.maximum(h1, 0.0)
    h2 = jnp.dot(mx(h1), mx(w2T), preferred_element_type=f32) + b2   # (BL, D)
    x = _layernorm(x + h2, g2, be2)

    # ---- final projection, lane-dense output (cols >= BLOCK_NUM are zero) ----
    out_ref[...] = jnp.dot(mx(x), mx(wpT),
                           preferred_element_type=f32) + bp          # (BL, 128)


def transformer_router_forward(task_embed, params):
    """task_embed: (1, B, D) -- same input the PyTorch module's forward expects."""
    assert task_embed.shape == (1, BATCH, D_MODEL)
    task2d = task_embed[0]                                           # (B, D)
    # Layout plumbing only (matches the module's .expand): replicate each task
    # row over the ALL_LAYERS sequence positions -> (B*L, D), batch-major rows.
    task_rows = jnp.broadcast_to(
        task2d[:, None, :], (BATCH, ALL_LAYERS, D_MODEL)).reshape(BL, D_MODEL)
    slab = pack_params(params, BATCH)

    vmem = pl.BlockSpec(memory_space=pltpu.MemorySpace.VMEM)
    out = pl.pallas_call(
        router_kernel,
        out_shape=jax.ShapeDtypeStruct((BL, LANES), jnp.float32),
        in_specs=[vmem, vmem],
        out_specs=vmem,
    )(task_rows, slab)                                               # (B*L, 128)

    x = out[:, :BLOCK_NUM].reshape(BATCH, ALL_LAYERS, BLOCK_NUM)
    x = jnp.transpose(x, (1, 0, 2))                                  # (L, B, P) like PyTorch
    return x[:ENCODER_LAYERS], x[ENCODER_LAYERS:]


def init_params(key):
    ks = jax.random.split(key, 16)
    w = lambda k, shape, s=0.02: (s * jax.random.normal(k, shape)).astype(jnp.float32)
    return {
        'pos':   w(ks[0], (ALL_LAYERS, D_MODEL)),                    # nn.Embedding weight
        'w_in':  w(ks[1], (3 * D_MODEL, D_MODEL)),                   # MHA in_proj_weight
        'b_in':  w(ks[2], (3 * D_MODEL,)),                           # MHA in_proj_bias
        'w_out': w(ks[3], (D_MODEL, D_MODEL)),                       # MHA out_proj.weight
        'b_out': w(ks[4], (D_MODEL,)),                               # MHA out_proj.bias
        'g1':    jnp.ones((D_MODEL,), jnp.float32),                  # norm1 weight
        'be1':   jnp.zeros((D_MODEL,), jnp.float32),                 # norm1 bias
        'w1':    w(ks[5], (D_FF, D_MODEL)),                          # linear1.weight
        'b1':    w(ks[6], (D_FF,)),                                  # linear1.bias
        'w2':    w(ks[7], (D_MODEL, D_FF)),                          # linear2.weight
        'b2':    w(ks[8], (D_MODEL,)),                               # linear2.bias
        'g2':    jnp.ones((D_MODEL,), jnp.float32),                  # norm2 weight
        'be2':   jnp.zeros((D_MODEL,), jnp.float32),                 # norm2 bias
        'wp':    w(ks[9], (BLOCK_NUM, D_MODEL)),                     # proj.weight
        'bp':    w(ks[10], (BLOCK_NUM,)),                            # proj.bias
    }


def _reference_forward(task2d, p):
    """Pure-JAX f32 reference of the PyTorch forward (eval mode). Returns (L, B, P)."""
    x = task2d[:, None, :] + p['pos'][None, :, :]                    # (B, L, D)
    qkv = jnp.einsum('bld,ed->ble', x, p['w_in']) + p['b_in']
    q = qkv[..., :D_MODEL]
    k = qkv[..., D_MODEL:2 * D_MODEL]
    v = qkv[..., 2 * D_MODEL:]
    scale = 1.0 / math.sqrt(HEAD_DIM)
    heads = []
    for h in range(N_HEAD):
        sl = slice(h * HEAD_DIM, (h + 1) * HEAD_DIM)
        s = jnp.einsum('bqd,bkd->bqk', q[..., sl] * scale, k[..., sl])
        pr = jax.nn.softmax(s, axis=-1)
        heads.append(jnp.einsum('bqk,bkd->bqd', pr, v[..., sl]))
    o = jnp.concatenate(heads, axis=-1)
    attn = jnp.einsum('bld,ed->ble', o, p['w_out']) + p['b_out']

    def ln(y, g, b):
        mu = jnp.mean(y, -1, keepdims=True)
        var = jnp.mean((y - mu) ** 2, -1, keepdims=True)
        return (y - mu) * jax.lax.rsqrt(var + LN_EPS) * g + b

    x = ln(x + attn, p['g1'], p['be1'])
    h1 = jax.nn.relu(jnp.einsum('bld,fd->blf', x, p['w1']) + p['b1'])
    h2 = jnp.einsum('blf,df->bld', h1, p['w2']) + p['b2']
    x = ln(x + h2, p['g2'], p['be2'])
    out = jnp.einsum('bld,pd->blp', x, p['wp']) + p['bp']            # (B, L, P)
    return jnp.transpose(out, (1, 0, 2))


if __name__ == "__main__":
    key = jax.random.PRNGKey(0)
    pkey, xkey = jax.random.split(key)
    params = init_params(pkey)

    # task_embed (1, B, D): expanded over all_layers inside the forward pass
    task_embed = jax.random.normal(xkey, (1, BATCH, D_MODEL), dtype=jnp.float32)

    forward = jax.jit(transformer_router_forward)
    enc_dist, dec_dist = forward(task_embed, params)
    enc_dist = jax.block_until_ready(enc_dist)
    dec_dist = jax.block_until_ready(dec_dist)

    assert enc_dist.shape == (ENCODER_LAYERS, BATCH, BLOCK_NUM)
    assert dec_dist.shape == (DECODER_LAYERS, BATCH, BLOCK_NUM)

    # sanity-check against a pure-JAX f32 reference of the same math
    ref = _reference_forward(task_embed[0], params)                  # (L, B, P)
    got = jnp.concatenate([enc_dist, dec_dist], axis=0)
    assert jnp.allclose(got, ref, rtol=1e-2, atol=1e-2), (
        f"max abs err {jnp.max(jnp.abs(got - ref))}")
    print("KERNEL_OK")
</pallas_src>

<mosaic_0001>
module attributes {stable_mosaic.version = 11 : i64} {
  func.func @router_kernel(%arg0: memref<16x32xf32, #tpu.memory_space<vmem>>, %arg1: memref<296x128xf32, #tpu.memory_space<vmem>>, %arg2: memref<16x128xf32, #tpu.memory_space<vmem>>) attributes {dimension_semantics = [], scalar_prefetch = 0 : i64, scratch_operands = 0 : i64, tpu.core_type = #tpu.core_type<tc>} {
    %c0 = arith.constant 0 : index
    %c0_0 = arith.constant 0 : index
    %0 = vector.load %arg1[%c0, %c0_0] : memref<296x128xf32, #tpu.memory_space<vmem>>, vector<16x32xf32>
    %c16 = arith.constant 16 : index
    %c0_1 = arith.constant 0 : index
    %1 = vector.load %arg1[%c16, %c0_1] : memref<296x128xf32, #tpu.memory_space<vmem>>, vector<16x16xf32>
    %c32 = arith.constant 32 : index
    %c0_2 = arith.constant 0 : index
    %2 = vector.load %arg1[%c32, %c0_2] : memref<296x128xf32, #tpu.memory_space<vmem>>, vector<32x96xf32>
    %c64 = arith.constant 64 : index
    %c0_3 = arith.constant 0 : index
    %3 = vector.load %arg1[%c64, %c0_3] : memref<296x128xf32, #tpu.memory_space<vmem>>, vector<32x32xf32>
    %c96 = arith.constant 96 : index
    %c0_4 = arith.constant 0 : index
    %4 = vector.load %arg1[%c96, %c0_4] : memref<296x128xf32, #tpu.memory_space<vmem>>, vector<32x64xf32>
    %c128 = arith.constant 128 : index
    %c0_5 = arith.constant 0 : index
    %5 = vector.load %arg1[%c128, %c0_5] : memref<296x128xf32, #tpu.memory_space<vmem>>, vector<64x32xf32>
    %c192 = arith.constant 192 : index
    %c0_6 = arith.constant 0 : index
    %6 = vector.load %arg1[%c192, %c0_6] : memref<296x128xf32, #tpu.memory_space<vmem>>, vector<32x128xf32>
    %c224 = arith.constant 224 : index
    %c0_7 = arith.constant 0 : index
    %7 = vector.load %arg1[%c224, %c0_7] : memref<296x128xf32, #tpu.memory_space<vmem>>, vector<1x96xf32>
    %c232 = arith.constant 232 : index
    %c0_8 = arith.constant 0 : index
    %8 = vector.load %arg1[%c232, %c0_8] : memref<296x128xf32, #tpu.memory_space<vmem>>, vector<1x32xf32>
    %c240 = arith.constant 240 : index
    %c0_9 = arith.constant 0 : index
    %9 = vector.load %arg1[%c240, %c0_9] : memref<296x128xf32, #tpu.memory_space<vmem>>, vector<1x32xf32>
    %c248 = arith.constant 248 : index
    %c0_10 = arith.constant 0 : index
    %10 = vector.load %arg1[%c248, %c0_10] : memref<296x128xf32, #tpu.memory_space<vmem>>, vector<1x32xf32>
    %c256 = arith.constant 256 : index
    %c0_11 = arith.constant 0 : index
    %11 = vector.load %arg1[%c256, %c0_11] : memref<296x128xf32, #tpu.memory_space<vmem>>, vector<1x64xf32>
    %c264 = arith.constant 264 : index
    %c0_12 = arith.constant 0 : index
    %12 = vector.load %arg1[%c264, %c0_12] : memref<296x128xf32, #tpu.memory_space<vmem>>, vector<1x32xf32>
    %c272 = arith.constant 272 : index
    %c0_13 = arith.constant 0 : index
    %13 = vector.load %arg1[%c272, %c0_13] : memref<296x128xf32, #tpu.memory_space<vmem>>, vector<1x32xf32>
    %c280 = arith.constant 280 : index
    %c0_14 = arith.constant 0 : index
    %14 = vector.load %arg1[%c280, %c0_14] : memref<296x128xf32, #tpu.memory_space<vmem>>, vector<1x32xf32>
    %c288 = arith.constant 288 : index
    %c0_15 = arith.constant 0 : index
    %15 = vector.load %arg1[%c288, %c0_15] : memref<296x128xf32, #tpu.memory_space<vmem>>, vector<1x128xf32>
    %c0_16 = arith.constant 0 : index
    %c0_17 = arith.constant 0 : index
    %16 = vector.load %arg0[%c0_16, %c0_17] : memref<16x32xf32, #tpu.memory_space<vmem>>, vector<16x32xf32>
    %17 = arith.addf %16, %0 : vector<16x32xf32>
    %18 = arith.truncf %17 : vector<16x32xf32> to vector<16x32xbf16>
    %19 = arith.truncf %2 : vector<32x96xf32> to vector<32x96xbf16>
    %cst = arith.constant dense<0.000000e+00> : vector<16x96xf32>
    %20 = tpu.matmul %18, %19, %cst {dimension_numbers = #tpu.dot_dimension_numbers<[1], [0], [0], [1], [0, 0, 1, 1], [], []>} : vector<16x32xbf16>, vector<32x96xbf16>, vector<16x96xf32> -> vector<16x96xf32>
    %21 = vector.broadcast %7 : vector<1x96xf32> to vector<16x96xf32>
    %22 = arith.addf %20, %21 : vector<16x96xf32>
    %23 = arith.truncf %22 : vector<16x96xf32> to vector<16x96xbf16>
    %24 = vector.extract_strided_slice %23 {offsets = [0, 0], sizes = [16, 8], strides = [1, 1]} : vector<16x96xbf16> to vector<16x8xbf16>
    %25 = vector.extract_strided_slice %23 {offsets = [0, 8], sizes = [16, 8], strides = [1, 1]} : vector<16x96xbf16> to vector<16x8xbf16>
    %26 = vector.extract_strided_slice %23 {offsets = [0, 16], sizes = [16, 8], strides = [1, 1]} : vector<16x96xbf16> to vector<16x8xbf16>
    %27 = vector.extract_strided_slice %23 {offsets = [0, 24], sizes = [16, 8], strides = [1, 1]} : vector<16x96xbf16> to vector<16x8xbf16>
    %28 = vector.shape_cast %24 : vector<16x8xbf16> to vector<1x16x8xbf16>
    %29 = vector.shape_cast %25 : vector<16x8xbf16> to vector<1x16x8xbf16>
    %30 = vector.shape_cast %26 : vector<16x8xbf16> to vector<1x16x8xbf16>
    %31 = vector.shape_cast %27 : vector<16x8xbf16> to vector<1x16x8xbf16>
    %32 = tpu.concatenate %28, %29, %30, %31 in 0 : vector<1x16x8xbf16>, vector<1x16x8xbf16>, vector<1x16x8xbf16>, vector<1x16x8xbf16> -> vector<4x16x8xbf16>
    %33 = vector.extract_strided_slice %23 {offsets = [0, 32], sizes = [16, 8], strides = [1, 1]} : vector<16x96xbf16> to vector<16x8xbf16>
    %34 = vector.extract_strided_slice %23 {offsets = [0, 40], sizes = [16, 8], strides = [1, 1]} : vector<16x96xbf16> to vector<16x8xbf16>
    %35 = vector.extract_strided_slice %23 {offsets = [0, 48], sizes = [16, 8], strides = [1, 1]} : vector<16x96xbf16> to vector<16x8xbf16>
    %36 = vector.extract_strided_slice %23 {offsets = [0, 56], sizes = [16, 8], strides = [1, 1]} : vector<16x96xbf16> to vector<16x8xbf16>
    %37 = vector.shape_cast %33 : vector<16x8xbf16> to vector<1x16x8xbf16>
    %38 = vector.shape_cast %34 : vector<16x8xbf16> to vector<1x16x8xbf16>
    %39 = vector.shape_cast %35 : vector<16x8xbf16> to vector<1x16x8xbf16>
    %40 = vector.shape_cast %36 : vector<16x8xbf16> to vector<1x16x8xbf16>
    %41 = tpu.concatenate %37, %38, %39, %40 in 0 : vector<1x16x8xbf16>, vector<1x16x8xbf16>, vector<1x16x8xbf16>, vector<1x16x8xbf16> -> vector<4x16x8xbf16>
    %42 = vector.extract_strided_slice %23 {offsets = [0, 64], sizes = [16, 8], strides = [1, 1]} : vector<16x96xbf16> to vector<16x8xbf16>
    %43 = vector.extract_strided_slice %23 {offsets = [0, 72], sizes = [16, 8], strides = [1, 1]} : vector<16x96xbf16> to vector<16x8xbf16>
    %44 = vector.extract_strided_slice %23 {offsets = [0, 80], sizes = [16, 8], strides = [1, 1]} : vector<16x96xbf16> to vector<16x8xbf16>
    %45 = vector.extract_strided_slice %23 {offsets = [0, 88], sizes = [16, 8], strides = [1, 1]} : vector<16x96xbf16> to vector<16x8xbf16>
    %46 = vector.shape_cast %42 : vector<16x8xbf16> to vector<1x16x8xbf16>
    %47 = vector.shape_cast %43 : vector<16x8xbf16> to vector<1x16x8xbf16>
    %48 = vector.shape_cast %44 : vector<16x8xbf16> to vector<1x16x8xbf16>
    %49 = vector.shape_cast %45 : vector<16x8xbf16> to vector<1x16x8xbf16>
    %50 = tpu.concatenate %46, %47, %48, %49 in 0 : vector<1x16x8xbf16>, vector<1x16x8xbf16>, vector<1x16x8xbf16>, vector<1x16x8xbf16> -> vector<4x16x8xbf16>
    "tpu.trace_start"() <{level = 10 : i32, message = "hqd,hkd->hqk"}> : () -> ()
    %cst_18 = arith.constant dense<0.000000e+00> : vector<4x16x16xf32>
    %51 = tpu.matmul %32, %41, %cst_18 {dimension_numbers = #tpu.dot_dimension_numbers<[2], [2], [1], [1], [0, 0, 0, 1, 1, 1], [0], [0]>} : vector<4x16x8xbf16>, vector<4x16x8xbf16>, vector<4x16x16xf32> -> vector<4x16x16xf32>
    "tpu.trace_stop"() : () -> ()
    %cst_19 = arith.constant 0.353553385 : f32
    %52 = vector.broadcast %cst_19 : f32 to vector<4x16x16xf32>
    %53 = arith.mulf %51, %52 : vector<4x16x16xf32>
    %54 = vector.shape_cast %1 : vector<16x16xf32> to vector<1x16x16xf32>
    %55 = vector.broadcast %54 : vector<1x16x16xf32> to vector<4x16x16xf32>
    %56 = arith.addf %53, %55 : vector<4x16x16xf32>
    %cst_20 = arith.constant dense<0xFF800000> : vector<4x16xf32>
    %57 = vector.multi_reduction <maximumf>, %56, %cst_20 [2] : vector<4x16x16xf32> to vector<4x16xf32>
    %58 = vector.shape_cast %57 : vector<4x16xf32> to vector<4x16x1xf32>
    %59 = vector.broadcast %58 : vector<4x16x1xf32> to vector<4x16x16xf32>
    %60 = arith.subf %56, %59 : vector<4x16x16xf32>
    %61 = math.exp %60 : vector<4x16x16xf32>
    %cst_21 = arith.constant dense<0.000000e+00> : vector<4x16xf32>
    %62 = vector.multi_reduction <add>, %61, %cst_21 [2] : vector<4x16x16xf32> to vector<4x16xf32>
    %63 = vector.shape_cast %62 : vector<4x16xf32> to vector<4x16x1xf32>
    %64 = tpu.reciprocal %63 {approx = true} : vector<4x16x1xf32> -> vector<4x16x1xf32>
    %65 = vector.broadcast %64 : vector<4x16x1xf32> to vector<4x16x16xf32>
    %66 = arith.mulf %61, %65 : vector<4x16x16xf32>
    %67 = arith.truncf %66 : vector<4x16x16xf32> to vector<4x16x16xbf16>
    "tpu.trace_start"() <{level = 10 : i32, message = "hqk,hkd->hqd"}> : () -> ()
    %cst_22 = arith.constant dense<0.000000e+00> : vector<4x16x8xf32>
    %68 = tpu.matmul %67, %50, %cst_22 {dimension_numbers = #tpu.dot_dimension_numbers<[2], [1], [1], [2], [0, 0, 0, 1, 1, 2], [0], [0]>} : vector<4x16x16xbf16>, vector<4x16x8xbf16>, vector<4x16x8xf32> -> vector<4x16x8xf32>
    "tpu.trace_stop"() : () -> ()
    %69 = vector.extract_strided_slice %68 {offsets = [0, 0, 0], sizes = [1, 16, 8], strides = [1, 1, 1]} : vector<4x16x8xf32> to vector<1x16x8xf32>
    %70 = vector.shape_cast %69 : vector<1x16x8xf32> to vector<16x8xf32>
    %71 = vector.extract_strided_slice %68 {offsets = [1, 0, 0], sizes = [1, 16, 8], strides = [1, 1, 1]} : vector<4x16x8xf32> to vector<1x16x8xf32>
    %72 = vector.shape_cast %71 : vector<1x16x8xf32> to vector<16x8xf32>
    %73 = vector.extract_strided_slice %68 {offsets = [2, 0, 0], sizes = [1, 16, 8], strides = [1, 1, 1]} : vector<4x16x8xf32> to vector<1x16x8xf32>
    %74 = vector.shape_cast %73 : vector<1x16x8xf32> to vector<16x8xf32>
    %75 = vector.extract_strided_slice %68 {offsets = [3, 0, 0], sizes = [1, 16, 8], strides = [1, 1, 1]} : vector<4x16x8xf32> to vector<1x16x8xf32>
    %76 = vector.shape_cast %75 : vector<1x16x8xf32> to vector<16x8xf32>
    %77 = tpu.concatenate %70, %72, %74, %76 in 1 : vector<16x8xf32>, vector<16x8xf32>, vector<16x8xf32>, vector<16x8xf32> -> vector<16x32xf32>
    %78 = arith.truncf %77 : vector<16x32xf32> to vector<16x32xbf16>
    %79 = arith.truncf %3 : vector<32x32xf32> to vector<32x32xbf16>
    %cst_23 = arith.constant dense<0.000000e+00> : vector<16x32xf32>
    %80 = tpu.matmul %78, %79, %cst_23 {dimension_numbers = #tpu.dot_dimension_numbers<[1], [0], [0], [1], [0, 0, 1, 1], [], []>} : vector<16x32xbf16>, vector<32x32xbf16>, vector<16x32xf32> -> vector<16x32xf32>
    %81 = vector.broadcast %8 : vector<1x32xf32> to vector<16x32xf32>
    %82 = arith.addf %80, %81 : vector<16x32xf32>
    %83 = arith.addf %17, %82 : vector<16x32xf32>
    %cst_24 = arith.constant dense<0.000000e+00> : vector<16xf32>
    %84 = vector.multi_reduction <add>, %83, %cst_24 [1] : vector<16x32xf32> to vector<16xf32>
    %85 = vector.shape_cast %84 : vector<16xf32> to vector<16x1xf32>
    %cst_25 = arith.constant 3.200000e+01 : f32
    %86 = vector.broadcast %cst_25 : f32 to vector<16x1xf32>
    %87 = arith.divf %85, %86 : vector<16x1xf32>
    %88 = vector.broadcast %87 : vector<16x1xf32> to vector<16x32xf32>
    %89 = arith.subf %83, %88 : vector<16x32xf32>
    %90 = arith.mulf %89, %89 : vector<16x32xf32>
    %cst_26 = arith.constant dense<0.000000e+00> : vector<16xf32>
    %91 = vector.multi_reduction <add>, %90, %cst_26 [1] : vector<16x32xf32> to vector<16xf32>
    %92 = vector.shape_cast %91 : vector<16xf32> to vector<16x1xf32>
    %cst_27 = arith.constant 3.200000e+01 : f32
    %93 = vector.broadcast %cst_27 : f32 to vector<16x1xf32>
    %94 = arith.divf %92, %93 : vector<16x1xf32>
    %cst_28 = arith.constant 9.99999974E-6 : f32
    %95 = vector.broadcast %cst_28 : f32 to vector<16x1xf32>
    %96 = arith.addf %94, %95 : vector<16x1xf32>
    %97 = math.rsqrt %96 : vector<16x1xf32>
    %98 = vector.broadcast %97 : vector<16x1xf32> to vector<16x32xf32>
    %99 = arith.mulf %89, %98 : vector<16x32xf32>
    %100 = vector.broadcast %9 : vector<1x32xf32> to vector<16x32xf32>
    %101 = arith.mulf %99, %100 : vector<16x32xf32>
    %102 = vector.broadcast %10 : vector<1x32xf32> to vector<16x32xf32>
    %103 = arith.addf %101, %102 : vector<16x32xf32>
    %104 = arith.truncf %103 : vector<16x32xf32> to vector<16x32xbf16>
    %105 = arith.truncf %4 : vector<32x64xf32> to vector<32x64xbf16>
    %cst_29 = arith.constant dense<0.000000e+00> : vector<16x64xf32>
    %106 = tpu.matmul %104, %105, %cst_29 {dimension_numbers = #tpu.dot_dimension_numbers<[1], [0], [0], [1], [0, 0, 1, 1], [], []>} : vector<16x32xbf16>, vector<32x64xbf16>, vector<16x64xf32> -> vector<16x64xf32>
    %107 = vector.broadcast %11 : vector<1x64xf32> to vector<16x64xf32>
    %108 = arith.addf %106, %107 : vector<16x64xf32>
    %cst_30 = arith.constant 0.000000e+00 : f32
    %109 = vector.broadcast %cst_30 : f32 to vector<16x64xf32>
    %110 = arith.maximumf %108, %109 : vector<16x64xf32>
    %111 = arith.truncf %110 : vector<16x64xf32> to vector<16x64xbf16>
    %112 = arith.truncf %5 : vector<64x32xf32> to vector<64x32xbf16>
    %cst_31 = arith.constant dense<0.000000e+00> : vector<16x32xf32>
    %113 = tpu.matmul %111, %112, %cst_31 {dimension_numbers = #tpu.dot_dimension_numbers<[1], [0], [0], [1], [0, 0, 1, 1], [], []>} : vector<16x64xbf16>, vector<64x32xbf16>, vector<16x32xf32> -> vector<16x32xf32>
    %114 = vector.broadcast %12 : vector<1x32xf32> to vector<16x32xf32>
    %115 = arith.addf %113, %114 : vector<16x32xf32>
    %116 = arith.addf %103, %115 : vector<16x32xf32>
    %cst_32 = arith.constant dense<0.000000e+00> : vector<16xf32>
    %117 = vector.multi_reduction <add>, %116, %cst_32 [1] : vector<16x32xf32> to vector<16xf32>
    %118 = vector.shape_cast %117 : vector<16xf32> to vector<16x1xf32>
    %cst_33 = arith.constant 3.200000e+01 : f32
    %119 = vector.broadcast %cst_33 : f32 to vector<16x1xf32>
    %120 = arith.divf %118, %119 : vector<16x1xf32>
    %121 = vector.broadcast %120 : vector<16x1xf32> to vector<16x32xf32>
    %122 = arith.subf %116, %121 : vector<16x32xf32>
    %123 = arith.mulf %122, %122 : vector<16x32xf32>
    %cst_34 = arith.constant dense<0.000000e+00> : vector<16xf32>
    %124 = vector.multi_reduction <add>, %123, %cst_34 [1] : vector<16x32xf32> to vector<16xf32>
    %125 = vector.shape_cast %124 : vector<16xf32> to vector<16x1xf32>
    %cst_35 = arith.constant 3.200000e+01 : f32
    %126 = vector.broadcast %cst_35 : f32 to vector<16x1xf32>
    %127 = arith.divf %125, %126 : vector<16x1xf32>
    %cst_36 = arith.constant 9.99999974E-6 : f32
    %128 = vector.broadcast %cst_36 : f32 to vector<16x1xf32>
    %129 = arith.addf %127, %128 : vector<16x1xf32>
    %130 = math.rsqrt %129 : vector<16x1xf32>
    %131 = vector.broadcast %130 : vector<16x1xf32> to vector<16x32xf32>
    %132 = arith.mulf %122, %131 : vector<16x32xf32>
    %133 = vector.broadcast %13 : vector<1x32xf32> to vector<16x32xf32>
    %134 = arith.mulf %132, %133 : vector<16x32xf32>
    %135 = vector.broadcast %14 : vector<1x32xf32> to vector<16x32xf32>
    %136 = arith.addf %134, %135 : vector<16x32xf32>
    %137 = arith.truncf %136 : vector<16x32xf32> to vector<16x32xbf16>
    %138 = arith.truncf %6 : vector<32x128xf32> to vector<32x128xbf16>
    %cst_37 = arith.constant dense<0.000000e+00> : vector<16x128xf32>
    %139 = tpu.matmul %137, %138, %cst_37 {dimension_numbers = #tpu.dot_dimension_numbers<[1], [0], [0], [1], [0, 0, 1, 1], [], []>} : vector<16x32xbf16>, vector<32x128xbf16>, vector<16x128xf32> -> vector<16x128xf32>
    %140 = vector.broadcast %15 : vector<1x128xf32> to vector<16x128xf32>
    %141 = arith.addf %139, %140 : vector<16x128xf32>
    %c0_38 = arith.constant 0 : index
    %c0_39 = arith.constant 0 : index
    %142 = vector.load %arg2[%c0_38, %c0_39] : memref<16x128xf32, #tpu.memory_space<vmem>>, vector<16x128xf32>
    tpu.vector_store %arg2[%c0_38, %c0_39], %141 {strides = array<i32>} : memref<16x128xf32, #tpu.memory_space<vmem>>, vector<16x128xf32>,
    return
  }
}

</mosaic_0001>

<llo_original>
// kernel: transformer_router_forward.1
$region0: #{transformer_router_forward.1}
  #allocation0 [shape = 'u32[]', space=smem, size = 0x4, offset = 0x4, fixed_abs, tag = 'smem constant byte address 0x4 - core index']
  #allocation1 [shape = 'u32[144,128]{1,0:T(1,128)}', space=vmem, size = 0x12000, scoped, tag = 'internal scratch']
  %s0 = inlined_call_operand.vmem [shape: f32[16,32], index: 0, kind: input, shape index: {}]
  %s1 = inlined_call_operand.vmem [shape: f32[296,128], index: 1, kind: input, shape index: {}]
  %s2 = inlined_call_operand.vmem [shape: f32[16,128], index: 2, kind: output, shape index: {}]
  %s3 = sld [smem:[#allocation0]]
  $region18: #{transformer_router_forward.1} parent=0
    _
  %s5 = ssub.s32 1, %s3
  %s6 = scalar_select 0, %s5, %s3
  // Predicated region
  $region2: #{transformer_router_forward.1} parent=0 // pred_check
    _
  $region3: #{transformer_router_forward.1} parent=0 // pred_check_branch
    %8 = sbr.rel (0) target = $region5
  $region4: #{transformer_router_forward.1} parent=0 // pred_region
    _
  $region5: #{transformer_router_forward.1} parent=0 // pred_fallthru
    _
  // Predicated region
  $region6: #{transformer_router_forward.1} parent=0 // pred_check
    _
  $region7: #{transformer_router_forward.1} parent=0 // pred_check_branch
    %10 = sbr.rel (0) target = $region9
  $region8: #{transformer_router_forward.1} parent=0 // pred_region
    _
  $region9: #{transformer_router_forward.1} parent=0 // pred_fallthru
    _
  %v12 = vld [vmem:[%s1] sm:$0xff]
  %v13 = vld [vmem:[%s1 + $0x8] sm:$0xff]
  %v14 = vld [vmem:[%s1 + $0x10] sm:$0xff]
  %v15 = vld [vmem:[%s1 + $0x18] sm:$0xff]
  %v16 = vld [vmem:[%s1 + $0x20] sm:$0xff]
  %v17 = vld [vmem:[%s1 + $0x28] sm:$0xff]
  %v18 = vld [vmem:[%s1 + $0x30] sm:$0xff]
  %v19 = vld [vmem:[%s1 + $0x38] sm:$0xff]
  %v20 = vld [vmem:[%s1 + $0x40] sm:$0xff]
  %v21 = vld [vmem:[%s1 + $0x48] sm:$0xff]
  %v22 = vld [vmem:[%s1 + $0x50] sm:$0xff]
  %v23 = vld [vmem:[%s1 + $0x58] sm:$0xff]
  %v24 = vld [vmem:[%s1 + $0x60] sm:$0xff]
  %v25 = vld [vmem:[%s1 + $0x68] sm:$0xff]
  %v26 = vld [vmem:[%s1 + $0x70] sm:$0xff]
  %v27 = vld [vmem:[%s1 + $0x78] sm:$0xff]
  %v28 = vld [vmem:[%s1 + $0x80] sm:$0xff]
  %v29 = vld [vmem:[%s1 + $0x88] sm:$0xff]
  %v30 = vld [vmem:[%s1 + $0x90] sm:$0xff]
  %v31 = vld [vmem:[%s1 + $0x98] sm:$0xff]
  %v32 = vld [vmem:[%s1 + $0xa0] sm:$0xff]
  %v33 = vld [vmem:[%s1 + $0xa8] sm:$0xff]
  %v34 = vld [vmem:[%s1 + $0xb0] sm:$0xff]
  %v35 = vld [vmem:[%s1 + $0xb8] sm:$0xff]
  %v36 = vld [vmem:[%s1 + $0xc0] sm:$0xff]
  %v37 = vld [vmem:[%s1 + $0xc8] sm:$0xff]
  %v38 = vld [vmem:[%s1 + $0xd0] sm:$0xff]
  %v39 = vld [vmem:[%s1 + $0xd8] sm:$0xff]
  %v40 = vld [vmem:[%s1 + $0xe0] sm:$0x1]
  %v41 = vld [vmem:[%s1 + $0xe8] sm:$0x1]
  %v42 = vld [vmem:[%s1 + $0xf0] sm:$0x1]
  %v43 = vld [vmem:[%s1 + $0xf8] sm:$0x1]
  %v44 = vld [vmem:[%s1 + $0x100] sm:$0x1]
  %v45 = vld [vmem:[%s1 + $0x108] sm:$0x1]
  %v46 = vld [vmem:[%s1 + $0x110] sm:$0x1]
  %v47 = vld [vmem:[%s1 + $0x118] sm:$0x1]
  %v48 = vld [vmem:[%s1 + $0x120] sm:$0x1]
  %v49 = vld [vmem:[%s0] sm:$0xff]
  %v50 = vld [vmem:[%s0 + $0x8] sm:$0xff]
  %v51 = vadd.f32 %v49, %v12
  %v52 = vadd.f32 %v50, %v13
  %v53 = vpack.c.bf16 %v52, %v51
  %v54 = vpack.c.bf16 %v17, %v16
  %v55 = vpack.c.bf16 %v19, %v18
  %v56 = vlaneseq
  %v57 = vshrl.u32 %v56, 7
  %v58 = vsub.s32 0, %v57
  %v59 = vrot.slane %v40, %v58
  %vm60 = vcmask 261120
  %v62 = vsel %vm60, %v53, 0
  %64 = vmatprep.subr.bf16.mxu0 0
  %65 = vmatpush1.bf16.msra.mxu0 %v54
  %66 = vmatprep.subr.bf16.mxu0 0
  %67 = vmatpush1.bf16.msra.mxu0 %v55
  %68 = vmatprep.subr.bf16.mxu0 0
  %69 = vmatpush1.bf16.msra.mxu0 0
  %70 = vmatprep.subr.bf16.mxu0 0
  %71 = vmatpush1.bf16.msra.mxu0 0
  %72 = vmatprep.subr.bf16.mxu0 0
  %73 = vmatpush1.bf16.msra.mxu0 0
  %74 = vmatprep.subr.bf16.mxu0 0
  %75 = vmatpush1.bf16.msra.mxu0 0
  %76 = vmatprep.subr.bf16.mxu0 0
  %77 = vmatpush1.bf16.msra.mxu0 0
  %78 = vmatprep.subr.bf16.mxu0 0
  %79 = vmatpush1.bf16.msra.mxu0 0
  %80 = vmatprep.subr.bf16.mxu0 0
  %81 = vmatpush1.bf16.msra.mxu0 0
  %82 = vmatprep.subr.bf16.mxu0 0
  %83 = vmatpush1.bf16.msra.mxu0 0
  %84 = vmatprep.subr.bf16.mxu0 0
  %85 = vmatpush1.bf16.msra.mxu0 0
  %86 = vmatprep.subr.bf16.mxu0 0
  %87 = vmatpush1.bf16.msra.mxu0 0
  %88 = vmatprep.subr.bf16.mxu0 0
  %89 = vmatpush1.bf16.msra.mxu0 0
  %90 = vmatprep.subr.bf16.mxu0 0
  %91 = vmatpush1.bf16.msra.mxu0 0
  %92 = vmatprep.subr.bf16.mxu0 0
  %93 = vmatpush1.bf16.msra.mxu0 0
  %94 = vmatprep.subr.bf16.mxu0 0
  %95 = vmatpush1.bf16.msra.mxu0 0
  %96 = vmatprep.mubr.bf16.mxu0 0
  %97 = vmatmul.mubr.bf16.gmra.mrb[0].mxu0 %v62
  %v98 = vpop.f32.mrb[0].mxu0
  %v99 = vadd.f32 %v59, %v98
  %v100 = vpop.f32.mrb[0].mxu0
  %v101 = vpop.f32.mrb[0].mxu0
  %v102 = vadd.f32 %v59, %v101
  %v103 = vpop.f32.mrb[0].mxu0
  %104 = vdwg.mxu0
  %v105 = vpack.c.bf16 %v102, %v99
  %107 = vrot.lane.b32.xlu0 %v105, 120
  %v108 = vpop.permute.xlu0 %107
  %109 = vrot.lane.b32.xlu0 %v105, 112
  %v110 = vpop.permute.xlu0 %109
  %111 = vrot.lane.b32.xlu0 %v105, 104
  %v112 = vpop.permute.xlu0 %111
  %113 = vrot.lane.b32.xlu0 %v105, 96
  %v114 = vpop.permute.xlu0 %113
  %vm115 = vcmask 64512
  %v117 = vsel %vm115, %v105, 0
  %v120 = vsel %vm115, %v114, 0
  %122 = vmatprep.subr.bf16.mxu0 0
  %123 = vmatpush1.bf16.xpose.msra.mxu0 %v120
  %124 = vmatprep.subr.bf16.mxu0 0
  %125 = vmatpush1.bf16.xpose.msra.mxu0 0
  %126 = vmatprep.subr.bf16.mxu0 0
  %127 = vmatpush1.bf16.xpose.msra.mxu0 0
  %128 = vmatprep.subr.bf16.mxu0 0
  %129 = vmatpush1.bf16.xpose.msra.mxu0 0
  %130 = vmatprep.subr.bf16.mxu0 0
  %131 = vmatpush1.bf16.xpose.msra.mxu0 0
  %132 = vmatprep.subr.bf16.mxu0 0
  %133 = vmatpush1.bf16.xpose.msra.mxu0 0
  %134 = vmatprep.subr.bf16.mxu0 0
  %135 = vmatpush1.bf16.xpose.msra.mxu0 0
  %136 = vmatprep.subr.bf16.mxu0 0
  %137 = vmatpush1.bf16.xpose.msra.mxu0 0
  %138 = vmatprep.subr.bf16.mxu0 0
  %139 = vmatpush1.bf16.xpose.msra.mxu0 0
  %140 = vmatprep.subr.bf16.mxu0 0
  %141 = vmatpush1.bf16.xpose.msra.mxu0 0
  %142 = vmatprep.subr.bf16.mxu0 0
  %143 = vmatpush1.bf16.xpose.msra.mxu0 0
  %144 = vmatprep.subr.bf16.mxu0 0
  %145 = vmatpush1.bf16.xpose.msra.mxu0 0
  %146 = vmatprep.subr.bf16.mxu0 0
  %147 = vmatpush1.bf16.xpose.msra.mxu0 0
  %148 = vmatprep.subr.bf16.mxu0 0
  %149 = vmatpush1.bf16.xpose.msra.mxu0 0
  %150 = vmatprep.subr.bf16.mxu0 0
  %151 = vmatpush1.bf16.xpose.msra.mxu0 0
  %152 = vmatprep.subr.bf16.mxu0 0
  %153 = vmatpush1.bf16.xpose.msra.mxu0 0
  %154 = vmatprep.mubr.bf16.mxu0 0
  %155 = vmatmul.mubr.bf16.gmra.mrb[0].mxu0 %v117
  %v156 = vpop.f32.mrb[0].mxu0
  %v157 = vadd.f32 0.0, %v156
  %v158 = vpop.f32.mrb[0].mxu0
  %v159 = vpop.f32.mrb[0].mxu0
  %v160 = vadd.f32 0.0, %v159
  %v161 = vpop.f32.mrb[0].mxu0
  %162 = vdwg.mxu0
  %163 = vrot.lane.b32.xlu0 %v108, 96
  %v164 = vpop.permute.xlu0 %163
  %v166 = vsel %vm115, %v108, 0
  %v169 = vsel %vm115, %v164, 0
  %171 = vmatprep.subr.bf16.mxu0 0
  %172 = vmatpush1.bf16.xpose.msra.mxu0 %v169
  %173 = vmatprep.subr.bf16.mxu0 0
  %174 = vmatpush1.bf16.xpose.msra.mxu0 0
  %175 = vmatprep.subr.bf16.mxu0 0
  %176 = vmatpush1.bf16.xpose.msra.mxu0 0
  %177 = vmatprep.subr.bf16.mxu0 0
  %178 = vmatpush1.bf16.xpose.msra.mxu0 0
  %179 = vmatprep.subr.bf16.mxu0 0
  %180 = vmatpush1.bf16.xpose.msra.mxu0 0
  %181 = vmatprep.subr.bf16.mxu0 0
  %182 = vmatpush1.bf16.xpose.msra.mxu0 0
  %183 = vmatprep.subr.bf16.mxu0 0
  %184 = vmatpush1.bf16.xpose.msra.mxu0 0
  %185 = vmatprep.subr.bf16.mxu0 0
  %186 = vmatpush1.bf16.xpose.msra.mxu0 0
  %187 = vmatprep.subr.bf16.mxu0 0
  %188 = vmatpush1.bf16.xpose.msra.mxu0 0
  %189 = vmatprep.subr.bf16.mxu0 0
  %190 = vmatpush1.bf16.xpose.msra.mxu0 0
  %191 = vmatprep.subr.bf16.mxu0 0
  %192 = vmatpush1.bf16.xpose.msra.mxu0 0
  %193 = vmatprep.subr.bf16.mxu0 0
  %194 = vmatpush1.bf16.xpose.msra.mxu0 0
  %195 = vmatprep.subr.bf16.mxu0 0
  %196 = vmatpush1.bf16.xpose.msra.mxu0 0
  %197 = vmatprep.subr.bf16.mxu0 0
  %198 = vmatpush1.bf16.xpose.msra.mxu0 0
  %199 = vmatprep.subr.bf16.mxu0 0
  %200 = vmatpush1.bf16.xpose.msra.mxu0 0
  %201 = vmatprep.subr.bf16.mxu0 0
  %202 = vmatpush1.bf16.xpose.msra.mxu0 0
  %203 = vmatprep.mubr.bf16.mxu0 0
  %204 = vmatmul.mubr.bf16.gmra.mrb[0].mxu0 %v166
  %v205 = vpop.f32.mrb[0].mxu0
  %v206 = vadd.f32 0.0, %v205
  %v207 = vpop.f32.mrb[0].mxu0
  %v208 = vpop.f32.mrb[0].mxu0
  %v209 = vadd.f32 0.0, %v208
  %v210 = vpop.f32.mrb[0].mxu0
  %211 = vdwg.mxu0
  %212 = vrot.lane.b32.xlu0 %v110, 96
  %v213 = vpop.permute.xlu0 %212
  %v215 = vsel %vm115, %v110, 0
  %v218 = vsel %vm115, %v213, 0
  %220 = vmatprep.subr.bf16.mxu0 0
  %221 = vmatpush1.bf16.xpose.msra.mxu0 %v218
  %222 = vmatprep.subr.bf16.mxu0 0
  %223 = vmatpush1.bf16.xpose.msra.mxu0 0
  %224 = vmatprep.subr.bf16.mxu0 0
  %225 = vmatpush1.bf16.xpose.msra.mxu0 0
  %226 = vmatprep.subr.bf16.mxu0 0
  %227 = vmatpush1.bf16.xpose.msra.mxu0 0
  %228 = vmatprep.subr.bf16.mxu0 0
  %229 = vmatpush1.bf16.xpose.msra.mxu0 0
  %230 = vmatprep.subr.bf16.mxu0 0
  %231 = vmatpush1.bf16.xpose.msra.mxu0 0
  %232 = vmatprep.subr.bf16.mxu0 0
  %233 = vmatpush1.bf16.xpose.msra.mxu0 0
  %234 = vmatprep.subr.bf16.mxu0 0
  %235 = vmatpush1.bf16.xpose.msra.mxu0 0
  %236 = vmatprep.subr.bf16.mxu0 0
  %237 = vmatpush1.bf16.xpose.msra.mxu0 0
  %238 = vmatprep.subr.bf16.mxu0 0
  %239 = vmatpush1.bf16.xpose.msra.mxu0 0
  %240 = vmatprep.subr.bf16.mxu0 0
  %241 = vmatpush1.bf16.xpose.msra.mxu0 0
  %242 = vmatprep.subr.bf16.mxu0 0
  %243 = vmatpush1.bf16.xpose.msra.mxu0 0
  %244 = vmatprep.subr.bf16.mxu0 0
  %245 = vmatpush1.bf16.xpose.msra.mxu0 0
  %246 = vmatprep.subr.bf16.mxu0 0
  %247 = vmatpush1.bf16.xpose.msra.mxu0 0
  %248 = vmatprep.subr.bf16.mxu0 0
  %249 = vmatpush1.bf16.xpose.msra.mxu0 0
  %250 = vmatprep.subr.bf16.mxu0 0
  %251 = vmatpush1.bf16.xpose.msra.mxu0 0
  %252 = vmatprep.mubr.bf16.mxu0 0
  %253 = vmatmul.mubr.bf16.gmra.mrb[0].mxu0 %v215
  %v254 = vpop.f32.mrb[0].mxu0
  %v255 = vadd.f32 0.0, %v254
  %v256 = vpop.f32.mrb[0].mxu0
  %v257 = vpop.f32.mrb[0].mxu0
  %v258 = vadd.f32 0.0, %v257
  %v259 = vpop.f32.mrb[0].mxu0
  %260 = vdwg.mxu0
  %261 = vrot.lane.b32.xlu0 %v112, 96
  %v262 = vpop.permute.xlu0 %261
  %v264 = vsel %vm115, %v112, 0
  %v267 = vsel %vm115, %v262, 0
  %269 = vmatprep.subr.bf16.mxu0 0
  %270 = vmatpush1.bf16.xpose.msra.mxu0 %v267
  %271 = vmatprep.subr.bf16.mxu0 0
  %272 = vmatpush1.bf16.xpose.msra.mxu0 0
  %273 = vmatprep.subr.bf16.mxu0 0
  %274 = vmatpush1.bf16.xpose.msra.mxu0 0
  %275 = vmatprep.subr.bf16.mxu0 0
  %276 = vmatpush1.bf16.xpose.msra.mxu0 0
  %277 = vmatprep.subr.bf16.mxu0 0
  %278 = vmatpush1.bf16.xpose.msra.mxu0 0
  %279 = vmatprep.subr.bf16.mxu0 0
  %280 = vmatpush1.bf16.xpose.msra.mxu0 0
  %281 = vmatprep.subr.bf16.mxu0 0
  %282 = vmatpush1.bf16.xpose.msra.mxu0 0
  %283 = vmatprep.subr.bf16.mxu0 0
  %284 = vmatpush1.bf16.xpose.msra.mxu0 0
  %285 = vmatprep.subr.bf16.mxu0 0
  %286 = vmatpush1.bf16.xpose.msra.mxu0 0
  %287 = vmatprep.subr.bf16.mxu0 0
  %288 = vmatpush1.bf16.xpose.msra.mxu0 0
  %289 = vmatprep.subr.bf16.mxu0 0
  %290 = vmatpush1.bf16.xpose.msra.mxu0 0
  %291 = vmatprep.subr.bf16.mxu0 0
  %292 = vmatpush1.bf16.xpose.msra.mxu0 0
  %293 = vmatprep.subr.bf16.mxu0 0
  %294 = vmatpush1.bf16.xpose.msra.mxu0 0
  %295 = vmatprep.subr.bf16.mxu0 0
  %296 = vmatpush1.bf16.xpose.msra.mxu0 0
  %297 = vmatprep.subr.bf16.mxu0 0
  %298 = vmatpush1.bf16.xpose.msra.mxu0 0
  %299 = vmatprep.subr.bf16.mxu0 0
  %300 = vmatpush1.bf16.xpose.msra.mxu0 0
  %301 = vmatprep.mubr.bf16.mxu0 0
  %302 = vmatmul.mubr.bf16.gmra.mrb[0].mxu0 %v264
  %v303 = vpop.f32.mrb[0].mxu0
  %v304 = vadd.f32 0.0, %v303
  %v305 = vpop.f32.mrb[0].mxu0
  %v306 = vpop.f32.mrb[0].mxu0
  %v307 = vadd.f32 0.0, %v306
  %v308 = vpop.f32.mrb[0].mxu0
  %309 = vdwg.mxu0
  %v310 = vmul.f32 %v157, 0.35355338
  %v311 = vmul.f32 %v160, 0.35355338
  %v312 = vmul.f32 %v206, 0.35355338
  %v313 = vmul.f32 %v209, 0.35355338
  %v314 = vmul.f32 %v255, 0.35355338
  %v315 = vmul.f32 %v258, 0.35355338
  %v316 = vmul.f32 %v304, 0.35355338
  %v317 = vmul.f32 %v307, 0.35355338
  %v318 = vadd.f32 %v310, %v14
  %v319 = vadd.f32 %v311, %v15
  %v320 = vadd.f32 %v312, %v14
  %v321 = vadd.f32 %v313, %v15
  %v322 = vadd.f32 %v314, %v14
  %v323 = vadd.f32 %v315, %v15
  %v324 = vadd.f32 %v316, %v14
  %v325 = vadd.f32 %v317, %v15
  %vm326 = vcmask 130048
  %v327 = vsel %vm326, %v318, -inf
  %328 = vmax.xlane.f32.xlu0 %v327
  %v329 = vpop.xlane.xlu0 %328
  %v330 = vsel %vm326, %v319, -inf
  %331 = vmax.xlane.f32.xlu0 %v330
  %v332 = vpop.xlane.xlu0 %331
  %v333 = vsel %vm326, %v320, -inf
  %334 = vmax.xlane.f32.xlu0 %v333
  %v335 = vpop.xlane.xlu0 %334
  %v336 = vsel %vm326, %v321, -inf
  %337 = vmax.xlane.f32.xlu0 %v336
  %v338 = vpop.xlane.xlu0 %337
  %v339 = vsel %vm326, %v322, -inf
  %340 = vmax.xlane.f32.xlu0 %v339
  %v341 = vpop.xlane.xlu0 %340
  %v342 = vsel %vm326, %v323, -inf
  %343 = vmax.xlane.f32.xlu0 %v342
  %v344 = vpop.xlane.xlu0 %343
  %v345 = vsel %vm326, %v324, -inf
  %346 = vmax.xlane.f32.xlu0 %v345
  %v347 = vpop.xlane.xlu0 %346
  %v348 = vsel %vm326, %v325, -inf
  %349 = vmax.xlane.f32.xlu0 %v348
  %v350 = vpop.xlane.xlu0 %349
  %v351 = vsub.f32 %v318, %v329
  %v352 = vsub.f32 %v319, %v332
  %v353 = vsub.f32 %v320, %v335
  %v354 = vsub.f32 %v321, %v338
  %v355 = vsub.f32 %v322, %v341
  %v356 = vsub.f32 %v323, %v344
  %v357 = vsub.f32 %v324, %v347
  %v358 = vsub.f32 %v325, %v350
  %v359 = vmul.f32 %v351, 1.442695
  %v360 = vpow.pop %v359
  %v361 = vmul.f32 %v352, 1.442695
  %v362 = vpow.pop %v361
  %v363 = vmul.f32 %v353, 1.442695
  %v364 = vpow.pop %v363
  %v365 = vmul.f32 %v354, 1.442695
  %v366 = vpow.pop %v365
  %v367 = vmul.f32 %v355, 1.442695
  %v368 = vpow.pop %v367
  %v369 = vmul.f32 %v356, 1.442695
  %v370 = vpow.pop %v369
  %v371 = vmul.f32 %v357, 1.442695
  %v372 = vpow.pop %v371
  %v373 = vmul.f32 %v358, 1.442695
  %v374 = vpow.pop %v373
  %v375 = vsel %vm326, %v360, 0.0
  %376 = vadd.xlane.f32.xlu0 %v375
  %v377 = vpop.xlane.xlu0 %376
  %v378 = vsel %vm326, %v362, 0.0
  %379 = vadd.xlane.f32.xlu0 %v378
  %v380 = vpop.xlane.xlu0 %379
  %v381 = vsel %vm326, %v364, 0.0
  %382 = vadd.xlane.f32.xlu0 %v381
  %v383 = vpop.xlane.xlu0 %382
  %v384 = vsel %vm326, %v366, 0.0
  %385 = vadd.xlane.f32.xlu0 %v384
  %v386 = vpop.xlane.xlu0 %385
  %v387 = vsel %vm326, %v368, 0.0
  %388 = vadd.xlane.f32.xlu0 %v387
  %v389 = vpop.xlane.xlu0 %388
  %v390 = vsel %vm326, %v370, 0.0
  %391 = vadd.xlane.f32.xlu0 %v390
  %v392 = vpop.xlane.xlu0 %391
  %v393 = vsel %vm326, %v372, 0.0
  %394 = vadd.xlane.f32.xlu0 %v393
  %v395 = vpop.xlane.xlu0 %394
  %v396 = vsel %vm326, %v374, 0.0
  %397 = vadd.xlane.f32.xlu0 %v396
  %v398 = vpop.xlane.xlu0 %397
  %v399 = vrcp.pop %v377
  %v400 = vrcp.pop %v380
  %v401 = vrcp.pop %v383
  %v402 = vrcp.pop %v386
  %v403 = vrcp.pop %v389
  %v404 = vrcp.pop %v392
  %v405 = vrcp.pop %v395
  %v406 = vrcp.pop %v398
  %v407 = vmul.f32 %v360, %v399
  %v408 = vmul.f32 %v362, %v400
  %v409 = vmul.f32 %v364, %v401
  %v410 = vmul.f32 %v366, %v402
  %v411 = vmul.f32 %v368, %v403
  %v412 = vmul.f32 %v370, %v404
  %v413 = vmul.f32 %v372, %v405
  %v414 = vmul.f32 %v374, %v406
  %v415 = vpack.c.bf16 %v408, %v407
  %v416 = vpack.c.bf16 %v410, %v409
  %v417 = vpack.c.bf16 %v412, %v411
  %v418 = vpack.c.bf16 %v414, %v413
  %419 = vrot.lane.b32.xlu0 %v105, 64
  %v420 = vpop.permute.xlu0 %419
  %v423 = vsel %vm326, %v415, 0
  %425 = vmatprep.subr.bf16.mxu0 0
  %426 = vmatpush1.bf16.msra.mxu0 %v420
  %427 = vmatprep.subr.bf16.mxu0 0
  %428 = vmatpush1.bf16.msra.mxu0 0
  %429 = vmatprep.subr.bf16.mxu0 0
  %430 = vmatpush1.bf16.msra.mxu0 0
  %431 = vmatprep.subr.bf16.mxu0 0
  %432 = vmatpush1.bf16.msra.mxu0 0
  %433 = vmatprep.subr.bf16.mxu0 0
  %434 = vmatpush1.bf16.msra.mxu0 0
  %435 = vmatprep.subr.bf16.mxu0 0
  %436 = vmatpush1.bf16.msra.mxu0 0
  %437 = vmatprep.subr.bf16.mxu0 0
  %438 = vmatpush1.bf16.msra.mxu0 0
  %439 = vmatprep.subr.bf16.mxu0 0
  %440 = vmatpush1.bf16.msra.mxu0 0
  %441 = vmatprep.subr.bf16.mxu0 0
  %442 = vmatpush1.bf16.msra.mxu0 0
  %443 = vmatprep.subr.bf16.mxu0 0
  %444 = vmatpush1.bf16.msra.mxu0 0
  %445 = vmatprep.subr.bf16.mxu0 0
  %446 = vmatpush1.bf16.msra.mxu0 0
  %447 = vmatprep.subr.bf16.mxu0 0
  %448 = vmatpush1.bf16.msra.mxu0 0
  %449 = vmatprep.subr.bf16.mxu0 0
  %450 = vmatpush1.bf16.msra.mxu0 0
  %451 = vmatprep.subr.bf16.mxu0 0
  %452 = vmatpush1.bf16.msra.mxu0 0
  %453 = vmatprep.subr.bf16.mxu0 0
  %454 = vmatpush1.bf16.msra.mxu0 0
  %455 = vmatprep.subr.bf16.mxu0 0
  %456 = vmatpush1.bf16.msra.mxu0 0
  %457 = vmatprep.mubr.bf16.mxu0 0
  %458 = vmatmul.mubr.bf16.gmra.mrb[0].mxu0 %v423
  %v459 = vpop.f32.mrb[0].mxu0
  %v460 = vadd.f32 0.0, %v459
  %v461 = vpop.f32.mrb[0].mxu0
  %v462 = vpop.f32.mrb[0].mxu0
  %v463 = vadd.f32 0.0, %v462
  %v464 = vpop.f32.mrb[0].mxu0
  %465 = vdwg.mxu0
  %466 = vrot.lane.b32.xlu0 %v108, 64
  %v467 = vpop.permute.xlu0 %466
  %v470 = vsel %vm326, %v416, 0
  %472 = vmatprep.subr.bf16.mxu0 0
  %473 = vmatpush1.bf16.msra.mxu0 %v467
  %474 = vmatprep.subr.bf16.mxu0 0
  %475 = vmatpush1.bf16.msra.mxu0 0
  %476 = vmatprep.subr.bf16.mxu0 0
  %477 = vmatpush1.bf16.msra.mxu0 0
  %478 = vmatprep.subr.bf16.mxu0 0
  %479 = vmatpush1.bf16.msra.mxu0 0
  %480 = vmatprep.subr.bf16.mxu0 0
  %481 = vmatpush1.bf16.msra.mxu0 0
  %482 = vmatprep.subr.bf16.mxu0 0
  %483 = vmatpush1.bf16.msra.mxu0 0
  %484 = vmatprep.subr.bf16.mxu0 0
  %485 = vmatpush1.bf16.msra.mxu0 0
  %486 = vmatprep.subr.bf16.mxu0 0
  %487 = vmatpush1.bf16.msra.mxu0 0
  %488 = vmatprep.subr.bf16.mxu0 0
  %489 = vmatpush1.bf16.msra.mxu0 0
  %490 = vmatprep.subr.bf16.mxu0 0
  %491 = vmatpush1.bf16.msra.mxu0 0
  %492 = vmatprep.subr.bf16.mxu0 0
  %493 = vmatpush1.bf16.msra.mxu0 0
  %494 = vmatprep.subr.bf16.mxu0 0
  %495 = vmatpush1.bf16.msra.mxu0 0
  %496 = vmatprep.subr.bf16.mxu0 0
  %497 = vmatpush1.bf16.msra.mxu0 0
  %498 = vmatprep.subr.bf16.mxu0 0
  %499 = vmatpush1.bf16.msra.mxu0 0
  %500 = vmatprep.subr.bf16.mxu0 0
  %501 = vmatpush1.bf16.msra.mxu0 0
  %502 = vmatprep.subr.bf16.mxu0 0
  %503 = vmatpush1.bf16.msra.mxu0 0
  %504 = vmatprep.mubr.bf16.mxu0 0
  %505 = vmatmul.mubr.bf16.gmra.mrb[0].mxu0 %v470
  %v506 = vpop.f32.mrb[0].mxu0
  %v507 = vadd.f32 0.0, %v506
  %v508 = vpop.f32.mrb[0].mxu0
  %v509 = vpop.f32.mrb[0].mxu0
  %v510 = vadd.f32 0.0, %v509
  %v511 = vpop.f32.mrb[0].mxu0
  %512 = vdwg.mxu0
  %513 = vrot.lane.b32.xlu0 %v110, 64
  %v514 = vpop.permute.xlu0 %513
  %v517 = vsel %vm326, %v417, 0
  %519 = vmatprep.subr.bf16.mxu0 0
  %520 = vmatpush1.bf16.msra.mxu0 %v514
  %521 = vmatprep.subr.bf16.mxu0 0
  %522 = vmatpush1.bf16.msra.mxu0 0
  %523 = vmatprep.subr.bf16.mxu0 0
  %524 = vmatpush1.bf16.msra.mxu0 0
  %525 = vmatprep.subr.bf16.mxu0 0
  %526 = vmatpush1.bf16.msra.mxu0 0
  %527 = vmatprep.subr.bf16.mxu0 0
  %528 = vmatpush1.bf16.msra.mxu0 0
  %529 = vmatprep.subr.bf16.mxu0 0
  %530 = vmatpush1.bf16.msra.mxu0 0
  %531 = vmatprep.subr.bf16.mxu0 0
  %532 = vmatpush1.bf16.msra.mxu0 0
  %533 = vmatprep.subr.bf16.mxu0 0
  %534 = vmatpush1.bf16.msra.mxu0 0
  %535 = vmatprep.subr.bf16.mxu0 0
  %536 = vmatpush1.bf16.msra.mxu0 0
  %537 = vmatprep.subr.bf16.mxu0 0
  %538 = vmatpush1.bf16.msra.mxu0 0
  %539 = vmatprep.subr.bf16.mxu0 0
  %540 = vmatpush1.bf16.msra.mxu0 0
  %541 = vmatprep.subr.bf16.mxu0 0
  %542 = vmatpush1.bf16.msra.mxu0 0
  %543 = vmatprep.subr.bf16.mxu0 0
  %544 = vmatpush1.bf16.msra.mxu0 0
  %545 = vmatprep.subr.bf16.mxu0 0
  %546 = vmatpush1.bf16.msra.mxu0 0
  %547 = vmatprep.subr.bf16.mxu0 0
  %548 = vmatpush1.bf16.msra.mxu0 0
  %549 = vmatprep.subr.bf16.mxu0 0
  %550 = vmatpush1.bf16.msra.mxu0 0
  %551 = vmatprep.mubr.bf16.mxu0 0
  %552 = vmatmul.mubr.bf16.gmra.mrb[0].mxu0 %v517
  %v553 = vpop.f32.mrb[0].mxu0
  %v554 = vadd.f32 0.0, %v553
  %v555 = vpop.f32.mrb[0].mxu0
  %v556 = vpop.f32.mrb[0].mxu0
  %v557 = vadd.f32 0.0, %v556
  %v558 = vpop.f32.mrb[0].mxu0
  %559 = vdwg.mxu0
  %560 = vrot.lane.b32.xlu0 %v112, 64
  %v561 = vpop.permute.xlu0 %560
  %v564 = vsel %vm326, %v418, 0
  %566 = vmatprep.subr.bf16.mxu0 0
  %567 = vmatpush1.bf16.msra.mxu0 %v561
  %568 = vmatprep.subr.bf16.mxu0 0
  %569 = vmatpush1.bf16.msra.mxu0 0
  %570 = vmatprep.subr.bf16.mxu0 0
  %571 = vmatpush1.bf16.msra.mxu0 0
  %572 = vmatprep.subr.bf16.mxu0 0
  %573 = vmatpush1.bf16.msra.mxu0 0
  %574 = vmatprep.subr.bf16.mxu0 0
  %575 = vmatpush1.bf16.msra.mxu0 0
  %576 = vmatprep.subr.bf16.mxu0 0
  %577 = vmatpush1.bf16.msra.mxu0 0
  %578 = vmatprep.subr.bf16.mxu0 0
  %579 = vmatpush1.bf16.msra.mxu0 0
  %580 = vmatprep.subr.bf16.mxu0 0
  %581 = vmatpush1.bf16.msra.mxu0 0
  %582 = vmatprep.subr.bf16.mxu0 0
  %583 = vmatpush1.bf16.msra.mxu0 0
  %584 = vmatprep.subr.bf16.mxu0 0
  %585 = vmatpush1.bf16.msra.mxu0 0
  %586 = vmatprep.subr.bf16.mxu0 0
  %587 = vmatpush1.bf16.msra.mxu0 0
  %588 = vmatprep.subr.bf16.mxu0 0
  %589 = vmatpush1.bf16.msra.mxu0 0
  %590 = vmatprep.subr.bf16.mxu0 0
  %591 = vmatpush1.bf16.msra.mxu0 0
  %592 = vmatprep.subr.bf16.mxu0 0
  %593 = vmatpush1.bf16.msra.mxu0 0
  %594 = vmatprep.subr.bf16.mxu0 0
  %595 = vmatpush1.bf16.msra.mxu0 0
  %596 = vmatprep.subr.bf16.mxu0 0
  %597 = vmatpush1.bf16.msra.mxu0 0
  %598 = vmatprep.mubr.bf16.mxu0 0
  %599 = vmatmul.mubr.bf16.gmra.mrb[0].mxu0 %v564
  %v600 = vpop.f32.mrb[0].mxu0
  %v601 = vadd.f32 0.0, %v600
  %v602 = vpop.f32.mrb[0].mxu0
  %v603 = vpop.f32.mrb[0].mxu0
  %v604 = vadd.f32 0.0, %v603
  %v605 = vpop.f32.mrb[0].mxu0
  %606 = vdwg.mxu0
  %609 = vrot.lane.b32.xlu0 %v507, 8
  %v610 = vpop.permute.xlu0 %609
  %611 = vrot.lane.b32.xlu0 %v510, 8
  %v612 = vpop.permute.xlu0 %611
  %617 = vrot.lane.b32.xlu0 %v554, 16
  %v618 = vpop.permute.xlu0 %617
  %619 = vrot.lane.b32.xlu0 %v557, 16
  %v620 = vpop.permute.xlu0 %619
  %625 = vrot.lane.b32.xlu0 %v601, 24
  %v626 = vpop.permute.xlu0 %625
  %627 = vrot.lane.b32.xlu0 %v604, 24
  %v628 = vpop.permute.xlu0 %627
  %v631 = vsel %vm115, %v460, %v610
  %v632 = vsel %vm115, %v463, %v612
  %v633 = vsel %vm326, %v631, %v618
  %v634 = vsel %vm326, %v632, %v620
  %vm635 = vcmask 195584
  %v636 = vsel %vm635, %v633, %v626
  %v637 = vsel %vm635, %v634, %v628
  %v638 = vpack.c.bf16 %v637, %v636
  %v639 = vpack.c.bf16 %v21, %v20
  %v640 = vpack.c.bf16 %v23, %v22
  %v641 = vlaneseq
  %v642 = vshrl.u32 %v641, 7
  %v643 = vsub.s32 0, %v642
  %v644 = vrot.slane %v41, %v643
  %v646 = vsel %vm60, %v638, 0
  %648 = vmatprep.subr.bf16.mxu0 0
  %649 = vmatpush1.bf16.msra.mxu0 %v639
  %650 = vmatprep.subr.bf16.mxu0 0
  %651 = vmatpush1.bf16.msra.mxu0 %v640
  %652 = vmatprep.subr.bf16.mxu0 0
  %653 = vmatpush1.bf16.msra.mxu0 0
  %654 = vmatprep.subr.bf16.mxu0 0
  %655 = vmatpush1.bf16.msra.mxu0 0
  %656 = vmatprep.subr.bf16.mxu0 0
  %657 = vmatpush1.bf16.msra.mxu0 0
  %658 = vmatprep.subr.bf16.mxu0 0
  %659 = vmatpush1.bf16.msra.mxu0 0
  %660 = vmatprep.subr.bf16.mxu0 0
  %661 = vmatpush1.bf16.msra.mxu0 0
  %662 = vmatprep.subr.bf16.mxu0 0
  %663 = vmatpush1.bf16.msra.mxu0 0
  %664 = vmatprep.subr.bf16.mxu0 0
  %665 = vmatpush1.bf16.msra.mxu0 0
  %666 = vmatprep.subr.bf16.mxu0 0
  %667 = vmatpush1.bf16.msra.mxu0 0
  %668 = vmatprep.subr.bf16.mxu0 0
  %669 = vmatpush1.bf16.msra.mxu0 0
  %670 = vmatprep.subr.bf16.mxu0 0
  %671 = vmatpush1.bf16.msra.mxu0 0
  %672 = vmatprep.subr.bf16.mxu0 0
  %673 = vmatpush1.bf16.msra.mxu0 0
  %674 = vmatprep.subr.bf16.mxu0 0
  %675 = vmatpush1.bf16.msra.mxu0 0
  %676 = vmatprep.subr.bf16.mxu0 0
  %677 = vmatpush1.bf16.msra.mxu0 0
  %678 = vmatprep.subr.bf16.mxu0 0
  %679 = vmatpush1.bf16.msra.mxu0 0
  %680 = vmatprep.mubr.bf16.mxu0 0
  %681 = vmatmul.mubr.bf16.gmra.mrb[0].mxu0 %v646
  %v682 = vpop.f32.mrb[0].mxu0
  %v683 = vadd.f32 %v644, %v682
  %v684 = vpop.f32.mrb[0].mxu0
  %v685 = vpop.f32.mrb[0].mxu0
  %v686 = vadd.f32 %v644, %v685
  %v687 = vpop.f32.mrb[0].mxu0
  %688 = vdwg.mxu0
  %v689 = vadd.f32 %v51, %v683
  %v690 = vadd.f32 %v52, %v686
  %v691 = vsel %vm60, %v689, 0.0
  %692 = vadd.xlane.f32.xlu0 %v691
  %v693 = vpop.xlane.xlu0 %692
  %v694 = vsel %vm60, %v690, 0.0
  %695 = vadd.xlane.f32.xlu0 %v694
  %v696 = vpop.xlane.xlu0 %695
  %v697 = vrcp.pop 32.0
  %v698 = vmul.f32 %v693, %v697
  %v699 = vmul.f32 %v696, %v697
  %v700 = vsub.f32 %v689, %v698
  %v701 = vsub.f32 %v690, %v699
  %v702 = vmul.f32 %v700, %v700
  %v703 = vmul.f32 %v701, %v701
  %v704 = vsel %vm60, %v702, 0.0
  %705 = vadd.xlane.f32.xlu0 %v704
  %v706 = vpop.xlane.xlu0 %705
  %v707 = vsel %vm60, %v703, 0.0
  %708 = vadd.xlane.f32.xlu0 %v707
  %v709 = vpop.xlane.xlu0 %708
  %v710 = vmul.f32 %v706, %v697
  %v711 = vmul.f32 %v709, %v697
  %v712 = vadd.f32 %v710, 1e-05
  %v713 = vadd.f32 %v711, 1e-05
  %v714 = vrsqrt.pop %v712
  %v715 = vrsqrt.pop %v713
  %v716 = vmul.f32 %v700, %v714
  %v717 = vmul.f32 %v701, %v715
  %v718 = vlaneseq
  %v719 = vshrl.u32 %v718, 7
  %v720 = vsub.s32 0, %v719
  %v721 = vrot.slane %v42, %v720
  %v722 = vmul.f32 %v716, %v721
  %v723 = vmul.f32 %v717, %v721
  %v724 = vlaneseq
  %v725 = vshrl.u32 %v724, 7
  %v726 = vsub.s32 0, %v725
  %v727 = vrot.slane %v43, %v726
  %v728 = vadd.f32 %v722, %v727
  %v729 = vadd.f32 %v723, %v727
  %v730 = vpack.c.bf16 %v729, %v728
  %v731 = vpack.c.bf16 %v25, %v24
  %v732 = vpack.c.bf16 %v27, %v26
  %v733 = vlaneseq
  %v734 = vshrl.u32 %v733, 7
  %v735 = vsub.s32 0, %v734
  %v736 = vrot.slane %v44, %v735
  %v738 = vsel %vm60, %v730, 0
  %740 = vmatprep.subr.bf16.mxu0 0
  %741 = vmatpush1.bf16.msra.mxu0 %v731
  %742 = vmatprep.subr.bf16.mxu0 0
  %743 = vmatpush1.bf16.msra.mxu0 %v732
  %744 = vmatprep.subr.bf16.mxu0 0
  %745 = vmatpush1.bf16.msra.mxu0 0
  %746 = vmatprep.subr.bf16.mxu0 0
  %747 = vmatpush1.bf16.msra.mxu0 0
  %748 = vmatprep.subr.bf16.mxu0 0
  %749 = vmatpush1.bf16.msra.mxu0 0
  %750 = vmatprep.subr.bf16.mxu0 0
  %751 = vmatpush1.bf16.msra.mxu0 0
  %752 = vmatprep.subr.bf16.mxu0 0
  %753 = vmatpush1.bf16.msra.mxu0 0
  %754 = vmatprep.subr.bf16.mxu0 0
  %755 = vmatpush1.bf16.msra.mxu0 0
  %756 = vmatprep.subr.bf16.mxu0 0
  %757 = vmatpush1.bf16.msra.mxu0 0
  %758 = vmatprep.subr.bf16.mxu0 0
  %759 = vmatpush1.bf16.msra.mxu0 0
  %760 = vmatprep.subr.bf16.mxu0 0
  %761 = vmatpush1.bf16.msra.mxu0 0
  %762 = vmatprep.subr.bf16.mxu0 0
  %763 = vmatpush1.bf16.msra.mxu0 0
  %764 = vmatprep.subr.bf16.mxu0 0
  %765 = vmatpush1.bf16.msra.mxu0 0
  %766 = vmatprep.subr.bf16.mxu0 0
  %767 = vmatpush1.bf16.msra.mxu0 0
  %768 = vmatprep.subr.bf16.mxu0 0
  %769 = vmatpush1.bf16.msra.mxu0 0
  %770 = vmatprep.subr.bf16.mxu0 0
  %771 = vmatpush1.bf16.msra.mxu0 0
  %772 = vmatprep.mubr.bf16.mxu0 0
  %773 = vmatmul.mubr.bf16.gmra.mrb[0].mxu0 %v738
  %v774 = vpop.f32.mrb[0].mxu0
  %v775 = vadd.f32 %v736, %v774
  %v776 = vpop.f32.mrb[0].mxu0
  %v777 = vpop.f32.mrb[0].mxu0
  %v778 = vadd.f32 %v736, %v777
  %v779 = vpop.f32.mrb[0].mxu0
  %780 = vdwg.mxu0
  %v781 = vmax.f32 %v775, 0.0
  %v782 = vmax.f32 %v778, 0.0
  %v783 = vpack.c.bf16 %v782, %v781
  %v784 = vpack.c.bf16 %v29, %v28
  %v785 = vpack.c.bf16 %v31, %v30
  %v786 = vpack.c.bf16 %v33, %v32
  %v787 = vpack.c.bf16 %v35, %v34
  %v788 = vlaneseq
  %v789 = vshrl.u32 %v788, 7
  %v790 = vsub.s32 0, %v789
  %v791 = vrot.slane %v45, %v790
  %vm792 = vcmask 523264
  %v794 = vsel %vm792, %v783, 0
  %796 = vmatprep.subr.bf16.mxu0 0
  %797 = vmatpush1.bf16.msra.mxu0 %v784
  %798 = vmatprep.subr.bf16.mxu0 0
  %799 = vmatpush1.bf16.msra.mxu0 %v785
  %800 = vmatprep.subr.bf16.mxu0 0
  %801 = vmatpush1.bf16.msra.mxu0 %v786
  %802 = vmatprep.subr.bf16.mxu0 0
  %803 = vmatpush1.bf16.msra.mxu0 %v787
  %804 = vmatprep.subr.bf16.mxu0 0
  %805 = vmatpush1.bf16.msra.mxu0 0
  %806 = vmatprep.subr.bf16.mxu0 0
  %807 = vmatpush1.bf16.msra.mxu0 0
  %808 = vmatprep.subr.bf16.mxu0 0
  %809 = vmatpush1.bf16.msra.mxu0 0
  %810 = vmatprep.subr.bf16.mxu0 0
  %811 = vmatpush1.bf16.msra.mxu0 0
  %812 = vmatprep.subr.bf16.mxu0 0
  %813 = vmatpush1.bf16.msra.mxu0 0
  %814 = vmatprep.subr.bf16.mxu0 0
  %815 = vmatpush1.bf16.msra.mxu0 0
  %816 = vmatprep.subr.bf16.mxu0 0
  %817 = vmatpush1.bf16.msra.mxu0 0
  %818 = vmatprep.subr.bf16.mxu0 0
  %819 = vmatpush1.bf16.msra.mxu0 0
  %820 = vmatprep.subr.bf16.mxu0 0
  %821 = vmatpush1.bf16.msra.mxu0 0
  %822 = vmatprep.subr.bf16.mxu0 0
  %823 = vmatpush1.bf16.msra.mxu0 0
  %824 = vmatprep.subr.bf16.mxu0 0
  %825 = vmatpush1.bf16.msra.mxu0 0
  %826 = vmatprep.subr.bf16.mxu0 0
  %827 = vmatpush1.bf16.msra.mxu0 0
  %828 = vmatprep.mubr.bf16.mxu0 0
  %829 = vmatmul.mubr.bf16.gmra.mrb[0].mxu0 %v794
  %v830 = vpop.f32.mrb[0].mxu0
  %v831 = vadd.f32 %v791, %v830
  %v832 = vpop.f32.mrb[0].mxu0
  %v833 = vpop.f32.mrb[0].mxu0
  %v834 = vadd.f32 %v791, %v833
  %v835 = vpop.f32.mrb[0].mxu0
  %836 = vdwg.mxu0
  %v837 = vadd.f32 %v728, %v831
  %v838 = vadd.f32 %v729, %v834
  %v839 = vsel %vm60, %v837, 0.0
  %840 = vadd.xlane.f32.xlu0 %v839
  %v841 = vpop.xlane.xlu0 %840
  %v842 = vsel %vm60, %v838, 0.0
  %843 = vadd.xlane.f32.xlu0 %v842
  %v844 = vpop.xlane.xlu0 %843
  %v845 = vmul.f32 %v841, %v697
  %v846 = vmul.f32 %v844, %v697
  %v847 = vsub.f32 %v837, %v845
  %v848 = vsub.f32 %v838, %v846
  %v849 = vmul.f32 %v847, %v847
  %v850 = vmul.f32 %v848, %v848
  %v851 = vsel %vm60, %v849, 0.0
  %852 = vadd.xlane.f32.xlu0 %v851
  %v853 = vpop.xlane.xlu0 %852
  %v854 = vsel %vm60, %v850, 0.0
  %855 = vadd.xlane.f32.xlu0 %v854
  %v856 = vpop.xlane.xlu0 %855
  %v857 = vmul.f32 %v853, %v697
  %v858 = vmul.f32 %v856, %v697
  %v859 = vadd.f32 %v857, 1e-05
  %v860 = vadd.f32 %v858, 1e-05
  %v861 = vrsqrt.pop %v859
  %v862 = vrsqrt.pop %v860
  %v863 = vmul.f32 %v847, %v861
  %v864 = vmul.f32 %v848, %v862
  %v865 = vlaneseq
  %v866 = vshrl.u32 %v865, 7
  %v867 = vsub.s32 0, %v866
  %v868 = vrot.slane %v46, %v867
  %v869 = vmul.f32 %v863, %v868
  %v870 = vmul.f32 %v864, %v868
  %v871 = vlaneseq
  %v872 = vshrl.u32 %v871, 7
  %v873 = vsub.s32 0, %v872
  %v874 = vrot.slane %v47, %v873
  %v875 = vadd.f32 %v869, %v874
  %v876 = vadd.f32 %v870, %v874
  %v877 = vpack.c.bf16 %v876, %v875
  %v878 = vpack.c.bf16 %v37, %v36
  %v879 = vpack.c.bf16 %v39, %v38
  %v880 = vlaneseq
  %v881 = vshrl.u32 %v880, 7
  %v882 = vsub.s32 0, %v881
  %v883 = vrot.slane %v48, %v882
  %v885 = vsel %vm60, %v877, 0
  %887 = vmatprep.subr.bf16.mxu0 0
  %888 = vmatpush1.bf16.msra.mxu0 %v878
  %889 = vmatprep.subr.bf16.mxu0 0
  %890 = vmatpush1.bf16.msra.mxu0 %v879
  %891 = vmatprep.subr.bf16.mxu0 0
  %892 = vmatpush1.bf16.msra.mxu0 0
  %893 = vmatprep.subr.bf16.mxu0 0
  %894 = vmatpush1.bf16.msra.mxu0 0
  %895 = vmatprep.subr.bf16.mxu0 0
  %896 = vmatpush1.bf16.msra.mxu0 0
  %897 = vmatprep.subr.bf16.mxu0 0
  %898 = vmatpush1.bf16.msra.mxu0 0
  %899 = vmatprep.subr.bf16.mxu0 0
  %900 = vmatpush1.bf16.msra.mxu0 0
  %901 = vmatprep.subr.bf16.mxu0 0
  %902 = vmatpush1.bf16.msra.mxu0 0
  %903 = vmatprep.subr.bf16.mxu0 0
  %904 = vmatpush1.bf16.msra.mxu0 0
  %905 = vmatprep.subr.bf16.mxu0 0
  %906 = vmatpush1.bf16.msra.mxu0 0
  %907 = vmatprep.subr.bf16.mxu0 0
  %908 = vmatpush1.bf16.msra.mxu0 0
  %909 = vmatprep.subr.bf16.mxu0 0
  %910 = vmatpush1.bf16.msra.mxu0 0
  %911 = vmatprep.subr.bf16.mxu0 0
  %912 = vmatpush1.bf16.msra.mxu0 0
  %913 = vmatprep.subr.bf16.mxu0 0
  %914 = vmatpush1.bf16.msra.mxu0 0
  %915 = vmatprep.subr.bf16.mxu0 0
  %916 = vmatpush1.bf16.msra.mxu0 0
  %917 = vmatprep.subr.bf16.mxu0 0
  %918 = vmatpush1.bf16.msra.mxu0 0
  %919 = vmatprep.mubr.bf16.mxu0 0
  %920 = vmatmul.mubr.bf16.gmra.mrb[0].mxu0 %v885
  %v921 = vpop.f32.mrb[0].mxu0
  %v922 = vadd.f32 %v883, %v921
  %v923 = vpop.f32.mrb[0].mxu0
  %v924 = vpop.f32.mrb[0].mxu0
  %v925 = vadd.f32 %v883, %v924
  %v926 = vpop.f32.mrb[0].mxu0
  %927 = vdwg.mxu0
  %928 = vst [vmem:[%s2] sm:$0xff] %v922
  %929 = vst [vmem:[%s2 + $0x8] sm:$0xff] %v925
  // Predicated region
  $region10: #{transformer_router_forward.1} parent=0 // pred_check
    _
  $region11: #{transformer_router_forward.1} parent=0 // pred_check_branch
    %931 = sbr.rel (0) target = $region13
  $region12: #{transformer_router_forward.1} parent=0 // pred_region
    _
  $region13: #{transformer_router_forward.1} parent=0 // pred_fallthru
    _
  // Predicated region
  $region14: #{transformer_router_forward.1} parent=0 // pred_check
    _
  $region15: #{transformer_router_forward.1} parent=0 // pred_check_branch
    %933 = sbr.rel (0) target = $region17
  $region16: #{transformer_router_forward.1} parent=0 // pred_region
    _
  $region17: #{transformer_router_forward.1} parent=0 // pred_fallthru
    _

</llo_original>
